<compile_context>
chip_gen: v5e
topology: v5e:2x2
jax: 0.10.0
libtpu: 0.0.40
codegen_flags: <defaults>
</compile_context>

<pallas_src>
import functools

import jax
import jax.numpy as jnp
from jax.experimental import pallas as pl
from jax.experimental.pallas import tpu as pltpu

ABITS = 8
QMAX = float(2 ** (ABITS - 1) - 1)  # 127.0

LANE_TILE_CAP = 131072              # upper bound on lane-tile width (elements)


# ----------------------------- small helpers ----------------------------- #
def _round_up(x, m):
    return (x + m - 1) // m * m


@functools.lru_cache(maxsize=1)
def _vmem_limit_bytes():
    """Per-generation scoped-VMEM budget: ~3/4 of physical VMEM, clamped to [32, 96] MiB.

    v7x (64 MiB phys) -> 48 MiB; v5e/v6e (128 MiB) -> 96 MiB; unknown -> 32 MiB.
    """
    cap = None
    try:
        cap = getattr(pltpu.get_tpu_info(), "vmem_capacity_bytes", None)
    except Exception:
        cap = None
    if not cap:
        return 32 * 1024 * 1024
    return int(max(32 * 1024 * 1024, min(cap * 3 // 4, 96 * 1024 * 1024)))


def _pick_lane_tile(total, cap):
    """Largest divisor of `total` that is a multiple of 128 and <= cap.

    `total` is always a multiple of 128 here (HW is padded), so 128 always divides and the
    search terminates with a valid tile.
    """
    cap = max(cap, 128)
    t = (min(cap, total) // 128) * 128
    while t >= 128:
        if total % t == 0:
            return t
        t -= 128
    return total


# --------------------- fused single-pass kernel (x VMEM-resident) --------------------- #
def _fused_small_kernel(x_ref, w_ref, b_ref, o_ref):
    # x_ref: (N, Cin, HWp) | w_ref: (Cout, Cin) | b_ref: (Cout, 1) | o_ref: (N, Cout, HWp)
    x = x_ref[...].astype(jnp.float32)
    amax = jnp.max(jnp.abs(x))
    inv_scale = jnp.where(amax > 0.0, QMAX / amax, jnp.float32(1.0))
    scale = jnp.where(amax > 0.0, amax / QMAX, jnp.float32(1.0))
    q = jnp.clip(jnp.round(x * inv_scale), -QMAX, QMAX)      # integer-valued f32
    w = w_ref[...] * scale                                    # dequant scale folded (tiny)
    b = b_ref[...]
    n, cin = x.shape[0], x.shape[1]
    for bi in range(n):                                       # N, Cin are tiny -> unroll
        acc = b + w[:, 0:1] * q[bi, 0:1, :]                   # exact f32 VPU FMAs (no MXU)
        for i in range(1, cin):
            acc = acc + w[:, i:i + 1] * q[bi, i:i + 1, :]
        o_ref[bi, :, :] = acc.astype(o_ref.dtype)


# ---------------- two-pass path, pass 1: running |x|-max accumulator ---------------- #
def _amax_kernel(x_ref, pmax_ref):
    # x_ref: (Rt, T1) full-sublane block of x viewed as (N*Cin, HWp).
    # pmax_ref: (8, 128) accumulator, resident across the lane-tile ("arbitrary") axis.
    @pl.when(pl.program_id(1) == 0)
    def _init():
        pmax_ref[...] = jnp.zeros_like(pmax_ref)

    tile_max = jnp.max(jnp.abs(x_ref[...].astype(jnp.float32)))
    pmax_ref[...] = jnp.maximum(pmax_ref[...], tile_max)


# ---------------- two-pass path, pass 2: fake-quant + 1x1 conv + bias ---------------- #
def _quant_conv_kernel(inv_scale_ref, x_ref, w_ref, b_ref, o_ref):
    # inv_scale_ref: (1,) f32 in SMEM | x_ref: (Cin, T2) | w_ref: (Cout, Cin) scale-folded
    # b_ref: (Cout, 1) | o_ref: (Cout, T2) lane-dense.
    inv_scale = inv_scale_ref[0]
    x = x_ref[...].astype(jnp.float32)
    q = jnp.clip(jnp.round(x * inv_scale), -QMAX, QMAX)
    w = w_ref[...]
    cin = x.shape[0]
    acc = b_ref[...] + w[:, 0:1] * q[0:1, :]                  # exact f32 VPU FMAs (K=4)
    for i in range(1, cin):
        acc = acc + w[:, i:i + 1] * q[i:i + 1, :]
    o_ref[...] = acc.astype(o_ref.dtype)


# --------------------------------- wrapper --------------------------------- #
@functools.partial(jax.jit, static_argnames=("force_two_pass",))
def quant_first_forward(x_nchw, w_oi11, bias, *, force_two_pass=False):
    """QuantFirst.forward with block = Conv2d(Cin, Cout, kernel_size=1, bias=True)."""
    N, Cin, H, W = x_nchw.shape
    Cout = w_oi11.shape[0]
    HW = H * W
    HWp = _round_up(HW, 128)                 # keep lane-dense, unmasked stores

    vmem_limit = _vmem_limit_bytes()
    step_budget = min(16 * 1024 * 1024, vmem_limit // 3)   # bytes for double-buffered blocks

    # NCHW -> (N, Cin, H*W) is a free reshape (spatial contiguous on lanes).
    x3d = x_nchw.reshape(N, Cin, HW)
    if HWp != HW:
        x3d = jnp.pad(x3d, ((0, 0), (0, 0), (0, HWp - HW)))  # zeros: don't change max|x|
    w2d = w_oi11.reshape(Cout, Cin).astype(jnp.float32)
    b2d = bias.reshape(Cout, 1).astype(jnp.float32)

    cparams_par = pltpu.CompilerParams(
        dimension_semantics=("parallel", "parallel"), vmem_limit_bytes=vmem_limit)

    x_bytes = N * Cin * HWp * 4
    o_bytes = N * Cout * HWp * 4
    use_fused = (not force_two_pass) and (x_bytes + o_bytes) <= 2 * 1024 * 1024

    if use_fused:
        # ---- fused single pass: x is VMEM-resident, read from HBM exactly once ----
        # TODO(synk): add a pipelined x-resident variant (manual DMA of x into VMEM scratch,
        # amax phase + conv phase) to extend single-read behaviour to multi-MiB inputs.
        out3d = pl.pallas_call(
            _fused_small_kernel,
            out_shape=jax.ShapeDtypeStruct((N, Cout, HWp), x_nchw.dtype),
            grid=(1,),
            in_specs=[
                pl.BlockSpec((N, Cin, HWp), lambda i: (0, 0, 0)),
                pl.BlockSpec((Cout, Cin), lambda i: (0, 0)),
                pl.BlockSpec((Cout, 1), lambda i: (0, 0)),
            ],
            out_specs=pl.BlockSpec((N, Cout, HWp), lambda i: (0, 0, 0)),
            compiler_params=pltpu.CompilerParams(
                dimension_semantics=("arbitrary",), vmem_limit_bytes=vmem_limit),
        )(x3d, w2d, b2d)
    else:
        # ---- pass 1: running max|x| with full-sublane blocks over the (N*Cin, HWp) view ----
        rows = N * Cin
        x2 = x3d.reshape(rows, HWp)                      # free reshape
        Rt = 8 if rows % 8 == 0 else rows                # fill all 8 sublanes when possible
        t1_cap = max(128, (step_budget // (2 * 4 * Rt)) // 128 * 128)
        T1 = _pick_lane_tile(HWp, min(t1_cap, LANE_TILE_CAP))
        grid1 = (rows // Rt, HWp // T1)

        pmax = pl.pallas_call(
            _amax_kernel,
            out_shape=jax.ShapeDtypeStruct((grid1[0], 8, 128), jnp.float32),
            grid=grid1,
            in_specs=[pl.BlockSpec((Rt, T1), lambda r, j: (r, j))],
            out_specs=pl.BlockSpec((None, 8, 128), lambda r, j: (r, 0, 0)),
            compiler_params=pltpu.CompilerParams(
                dimension_semantics=("parallel", "arbitrary"),
                vmem_limit_bytes=vmem_limit),
        )(x2)

        # Tiny scale math in XLA; fold dequant scale into the (Cout, Cin) weight once.
        amax = jnp.max(pmax)
        scale = jnp.where(amax > 0.0, amax / QMAX, jnp.float32(1.0))
        inv_scale = jnp.where(amax > 0.0, QMAX / amax,
                              jnp.float32(1.0)).reshape(1).astype(jnp.float32)
        w_scaled = (w2d * scale).astype(jnp.float32)

        # ---- pass 2: fake-quant + pointwise conv, lane-dense (Cout, T2) output ----
        per_lane_bytes = 4 * (_round_up(Cin, 8) + _round_up(Cout, 8))   # x + out, f32
        t2_cap = max(128, (step_budget // (2 * per_lane_bytes)) // 128 * 128)
        T2 = _pick_lane_tile(HWp, min(t2_cap, LANE_TILE_CAP))
        if N * (HWp // T2) < 2 and HWp >= 256:
            # Keep >=2 steps on a "parallel" axis so both v7x TensorCores have work.
            T2 = _pick_lane_tile(HWp, HWp // 2)
        grid2 = (N, HWp // T2)

        out3d = pl.pallas_call(
            _quant_conv_kernel,
            out_shape=jax.ShapeDtypeStruct((N, Cout, HWp), x_nchw.dtype),
            grid=grid2,
            in_specs=[
                pl.BlockSpec(memory_space=pltpu.MemorySpace.SMEM),      # inv_scale scalar
                pl.BlockSpec((None, Cin, T2), lambda n, j: (n, 0, j)),  # x tile (Cin, T2)
                pl.BlockSpec((Cout, Cin), lambda n, j: (0, 0)),         # scaled weight
                pl.BlockSpec((Cout, 1), lambda n, j: (0, 0)),           # bias column
            ],
            out_specs=pl.BlockSpec((None, Cout, T2), lambda n, j: (n, 0, j)),
            compiler_params=cparams_par,
        )(inv_scale, x3d, w_scaled, b2d)

    # Drop padding (if any); (N, Cout, H*W) -> NCHW is a free reshape.
    if HWp != HW:
        out3d = out3d[:, :, :HW]
    return out3d.reshape(N, Cout, H, W)


# --------------------------------- reference --------------------------------- #
def _reference(x_nchw, w_oi11, bias):
    """Pure-JAX reference of the same semantics (torch-style NCHW 1x1 conv).

    Quantization uses the multiply-by-inverse form (matches the kernel bit-for-bit); it is
    mathematically identical to torch's round(x / scale) except exactly at rounding ties.
    """
    amax = jnp.max(jnp.abs(x_nchw)).astype(jnp.float32)
    scale = jnp.where(amax > 0.0, amax / QMAX, jnp.float32(1.0))
    inv_scale = jnp.where(amax > 0.0, QMAX / amax, jnp.float32(1.0))
    x_q = jnp.clip(jnp.round(x_nchw * inv_scale), -QMAX, QMAX) * scale
    cout, cin = w_oi11.shape[0], w_oi11.shape[1]
    y = jnp.einsum("nchw,oc->nohw", x_q, w_oi11.reshape(cout, cin),
                   precision=jax.lax.Precision.HIGHEST)
    return y + bias.reshape(1, cout, 1, 1)


if __name__ == "__main__":
    key = jax.random.PRNGKey(0)
    kx, kw, kb = jax.random.split(key, 3)

    N, Cin, H, W, Cout = 2, 4, 16, 16, 8
    x = jax.random.normal(kx, (N, Cin, H, W), dtype=jnp.float32)
    # Deterministic "block" parameters: Conv2d(4, 8, kernel_size=1, bias=True)
    w = jax.random.normal(kw, (Cout, Cin, 1, 1), dtype=jnp.float32) * 0.1
    b = jax.random.normal(kb, (Cout,), dtype=jnp.float32) * 0.01

    ref = _reference(x, w, b)

    # Path A: fused single-pass kernel (x VMEM-resident) — the default at this size.
    out_a = jax.block_until_ready(quant_first_forward(x, w, b))
    assert out_a.shape == (N, Cout, H, W)
    assert jnp.allclose(out_a, ref, atol=1e-5, rtol=1e-5), "fused path mismatch vs reference"

    # Path B: two-pass tiled path, exercised explicitly at the same small shape.
    out_b = jax.block_until_ready(quant_first_forward(x, w, b, force_two_pass=True))
    assert out_b.shape == (N, Cout, H, W)
    assert jnp.allclose(out_b, ref, atol=1e-5, rtol=1e-5), "two-pass path mismatch vs reference"

    print("KERNEL_OK")
</pallas_src>

<mosaic_0001>
module attributes {stable_mosaic.version = 11 : i64} {
  func.func @_fused_small_kernel(%arg0: i32, %arg1: memref<2x4x256xf32, #tpu.memory_space<vmem>>, %arg2: memref<8x4xf32, #tpu.memory_space<vmem>>, %arg3: memref<8x1xf32, #tpu.memory_space<vmem>>, %arg4: memref<2x8x256xf32, #tpu.memory_space<vmem>>) attributes {dimension_semantics = [#tpu.dimension_semantics<arbitrary>], iteration_bounds = array<i64: 1>, scalar_prefetch = 0 : i64, scratch_operands = 0 : i64, tpu.core_type = #tpu.core_type<tc>, window_params = [{pipeline_mode = #tpu.pipeline_mode<synchronous>, transform_indices = @transform_0, window_bounds = array<i64: 2, 4, 256>}, {pipeline_mode = #tpu.pipeline_mode<synchronous>, transform_indices = @transform_1, window_bounds = array<i64: 8, 4>}, {pipeline_mode = #tpu.pipeline_mode<synchronous>, transform_indices = @transform_2, window_bounds = array<i64: 8, 1>}, {pipeline_mode = #tpu.pipeline_mode<synchronous>, transform_indices = @transform_3, window_bounds = array<i64: 2, 8, 256>}]} {
    %c0 = arith.constant 0 : index
    %c0_0 = arith.constant 0 : index
    %c0_1 = arith.constant 0 : index
    %0 = vector.load %arg1[%c0, %c0_0, %c0_1] : memref<2x4x256xf32, #tpu.memory_space<vmem>>, vector<2x4x256xf32>
    %1 = math.absf %0 : vector<2x4x256xf32>
    %2 = vector.shape_cast %1 : vector<2x4x256xf32> to vector<1x2x4x256xf32>
    %cst = arith.constant dense<0xFF800000> : vector<1xf32>
    %3 = vector.multi_reduction <maximumf>, %2, %cst [1, 2, 3] : vector<1x2x4x256xf32> to vector<1xf32>
    %4 = vector.shape_cast %3 : vector<1xf32> to vector<1x1x1x1xf32>
    %5 = vector.extract %4[0, 0, 0, 0] : f32 from vector<1x1x1x1xf32>
    %cst_2 = arith.constant 0.000000e+00 : f32
    %6 = arith.cmpf ogt, %5, %cst_2 : f32
    %cst_3 = arith.constant 1.270000e+02 : f32
    %7 = arith.divf %cst_3, %5 : f32
    %cst_4 = arith.constant 1.000000e+00 : f32
    %8 = arith.select %6, %7, %cst_4 : f32
    %cst_5 = arith.constant 0.000000e+00 : f32
    %9 = arith.cmpf ogt, %5, %cst_5 : f32
    %cst_6 = arith.constant 1.270000e+02 : f32
    %10 = arith.divf %5, %cst_6 : f32
    %cst_7 = arith.constant 1.000000e+00 : f32
    %11 = arith.select %9, %10, %cst_7 : f32
    %12 = vector.broadcast %8 : f32 to vector<2x4x256xf32>
    %13 = arith.mulf %0, %12 : vector<2x4x256xf32>
    %14 = math.roundeven %13 : vector<2x4x256xf32>
    %cst_8 = arith.constant -1.270000e+02 : f32
    %cst_9 = arith.constant 1.270000e+02 : f32
    %15 = vector.broadcast %cst_8 : f32 to vector<2x4x256xf32>
    %16 = arith.maximumf %15, %14 : vector<2x4x256xf32>
    %17 = vector.broadcast %cst_9 : f32 to vector<2x4x256xf32>
    %18 = arith.minimumf %17, %16 : vector<2x4x256xf32>
    %c0_10 = arith.constant 0 : index
    %c0_11 = arith.constant 0 : index
    %19 = vector.load %arg2[%c0_10, %c0_11] : memref<8x4xf32, #tpu.memory_space<vmem>>, vector<8x4xf32>
    %20 = vector.broadcast %11 : f32 to vector<8x4xf32>
    %21 = arith.mulf %19, %20 : vector<8x4xf32>
    %c0_12 = arith.constant 0 : index
    %c0_13 = arith.constant 0 : index
    %22 = vector.load %arg3[%c0_12, %c0_13] : memref<8x1xf32, #tpu.memory_space<vmem>>, vector<8x1xf32>
    %23 = vector.extract_strided_slice %21 {offsets = [0, 0], sizes = [8, 1], strides = [1, 1]} : vector<8x4xf32> to vector<8x1xf32>
    %24 = vector.extract_strided_slice %18 {offsets = [0, 0, 0], sizes = [1, 1, 256], strides = [1, 1, 1]} : vector<2x4x256xf32> to vector<1x1x256xf32>
    %25 = vector.shape_cast %24 : vector<1x1x256xf32> to vector<1x256xf32>
    %26 = vector.broadcast %23 : vector<8x1xf32> to vector<8x256xf32>
    %27 = vector.broadcast %25 : vector<1x256xf32> to vector<8x256xf32>
    %28 = arith.mulf %26, %27 : vector<8x256xf32>
    %29 = vector.broadcast %22 : vector<8x1xf32> to vector<8x256xf32>
    %30 = arith.addf %29, %28 : vector<8x256xf32>
    %31 = vector.extract_strided_slice %21 {offsets = [0, 1], sizes = [8, 1], strides = [1, 1]} : vector<8x4xf32> to vector<8x1xf32>
    %32 = vector.extract_strided_slice %18 {offsets = [0, 1, 0], sizes = [1, 1, 256], strides = [1, 1, 1]} : vector<2x4x256xf32> to vector<1x1x256xf32>
    %33 = vector.shape_cast %32 : vector<1x1x256xf32> to vector<1x256xf32>
    %34 = vector.broadcast %31 : vector<8x1xf32> to vector<8x256xf32>
    %35 = vector.broadcast %33 : vector<1x256xf32> to vector<8x256xf32>
    %36 = arith.mulf %34, %35 : vector<8x256xf32>
    %37 = arith.addf %30, %36 : vector<8x256xf32>
    %38 = vector.extract_strided_slice %21 {offsets = [0, 2], sizes = [8, 1], strides = [1, 1]} : vector<8x4xf32> to vector<8x1xf32>
    %39 = vector.extract_strided_slice %18 {offsets = [0, 2, 0], sizes = [1, 1, 256], strides = [1, 1, 1]} : vector<2x4x256xf32> to vector<1x1x256xf32>
    %40 = vector.shape_cast %39 : vector<1x1x256xf32> to vector<1x256xf32>
    %41 = vector.broadcast %38 : vector<8x1xf32> to vector<8x256xf32>
    %42 = vector.broadcast %40 : vector<1x256xf32> to vector<8x256xf32>
    %43 = arith.mulf %41, %42 : vector<8x256xf32>
    %44 = arith.addf %37, %43 : vector<8x256xf32>
    %45 = vector.extract_strided_slice %21 {offsets = [0, 3], sizes = [8, 1], strides = [1, 1]} : vector<8x4xf32> to vector<8x1xf32>
    %46 = vector.extract_strided_slice %18 {offsets = [0, 3, 0], sizes = [1, 1, 256], strides = [1, 1, 1]} : vector<2x4x256xf32> to vector<1x1x256xf32>
    %47 = vector.shape_cast %46 : vector<1x1x256xf32> to vector<1x256xf32>
    %48 = vector.broadcast %45 : vector<8x1xf32> to vector<8x256xf32>
    %49 = vector.broadcast %47 : vector<1x256xf32> to vector<8x256xf32>
    %50 = arith.mulf %48, %49 : vector<8x256xf32>
    %51 = arith.addf %44, %50 : vector<8x256xf32>
    %c0_14 = arith.constant 0 : index
    %c0_15 = arith.constant 0 : index
    %c0_16 = arith.constant 0 : index
    %52 = vector.load %arg4[%c0_14, %c0_15, %c0_16] : memref<2x8x256xf32, #tpu.memory_space<vmem>>, vector<1x8x256xf32>
    %53 = vector.shape_cast %52 : vector<1x8x256xf32> to vector<8x256xf32>
    %54 = vector.shape_cast %51 : vector<8x256xf32> to vector<1x8x256xf32>
    tpu.vector_store %arg4[%c0_14, %c0_15, %c0_16], %54 {strides = array<i32>} : memref<2x8x256xf32, #tpu.memory_space<vmem>>, vector<1x8x256xf32>,
    %55 = vector.extract_strided_slice %21 {offsets = [0, 0], sizes = [8, 1], strides = [1, 1]} : vector<8x4xf32> to vector<8x1xf32>
    %56 = vector.extract_strided_slice %18 {offsets = [1, 0, 0], sizes = [1, 1, 256], strides = [1, 1, 1]} : vector<2x4x256xf32> to vector<1x1x256xf32>
    %57 = vector.shape_cast %56 : vector<1x1x256xf32> to vector<1x256xf32>
    %58 = vector.broadcast %55 : vector<8x1xf32> to vector<8x256xf32>
    %59 = vector.broadcast %57 : vector<1x256xf32> to vector<8x256xf32>
    %60 = arith.mulf %58, %59 : vector<8x256xf32>
    %61 = vector.broadcast %22 : vector<8x1xf32> to vector<8x256xf32>
    %62 = arith.addf %61, %60 : vector<8x256xf32>
    %63 = vector.extract_strided_slice %21 {offsets = [0, 1], sizes = [8, 1], strides = [1, 1]} : vector<8x4xf32> to vector<8x1xf32>
    %64 = vector.extract_strided_slice %18 {offsets = [1, 1, 0], sizes = [1, 1, 256], strides = [1, 1, 1]} : vector<2x4x256xf32> to vector<1x1x256xf32>
    %65 = vector.shape_cast %64 : vector<1x1x256xf32> to vector<1x256xf32>
    %66 = vector.broadcast %63 : vector<8x1xf32> to vector<8x256xf32>
    %67 = vector.broadcast %65 : vector<1x256xf32> to vector<8x256xf32>
    %68 = arith.mulf %66, %67 : vector<8x256xf32>
    %69 = arith.addf %62, %68 : vector<8x256xf32>
    %70 = vector.extract_strided_slice %21 {offsets = [0, 2], sizes = [8, 1], strides = [1, 1]} : vector<8x4xf32> to vector<8x1xf32>
    %71 = vector.extract_strided_slice %18 {offsets = [1, 2, 0], sizes = [1, 1, 256], strides = [1, 1, 1]} : vector<2x4x256xf32> to vector<1x1x256xf32>
    %72 = vector.shape_cast %71 : vector<1x1x256xf32> to vector<1x256xf32>
    %73 = vector.broadcast %70 : vector<8x1xf32> to vector<8x256xf32>
    %74 = vector.broadcast %72 : vector<1x256xf32> to vector<8x256xf32>
    %75 = arith.mulf %73, %74 : vector<8x256xf32>
    %76 = arith.addf %69, %75 : vector<8x256xf32>
    %77 = vector.extract_strided_slice %21 {offsets = [0, 3], sizes = [8, 1], strides = [1, 1]} : vector<8x4xf32> to vector<8x1xf32>
    %78 = vector.extract_strided_slice %18 {offsets = [1, 3, 0], sizes = [1, 1, 256], strides = [1, 1, 1]} : vector<2x4x256xf32> to vector<1x1x256xf32>
    %79 = vector.shape_cast %78 : vector<1x1x256xf32> to vector<1x256xf32>
    %80 = vector.broadcast %77 : vector<8x1xf32> to vector<8x256xf32>
    %81 = vector.broadcast %79 : vector<1x256xf32> to vector<8x256xf32>
    %82 = arith.mulf %80, %81 : vector<8x256xf32>
    %83 = arith.addf %76, %82 : vector<8x256xf32>
    %c1 = arith.constant 1 : index
    %c0_17 = arith.constant 0 : index
    %c0_18 = arith.constant 0 : index
    %84 = vector.load %arg4[%c1, %c0_17, %c0_18] : memref<2x8x256xf32, #tpu.memory_space<vmem>>, vector<1x8x256xf32>
    %85 = vector.shape_cast %84 : vector<1x8x256xf32> to vector<8x256xf32>
    %86 = vector.shape_cast %83 : vector<8x256xf32> to vector<1x8x256xf32>
    tpu.vector_store %arg4[%c1, %c0_17, %c0_18], %86 {strides = array<i32>} : memref<2x8x256xf32, #tpu.memory_space<vmem>>, vector<1x8x256xf32>,
    return
  }
  func.func @transform_0(%arg0: i32) -> (i32, i32, i32) {
    %c0_i32 = arith.constant 0 : i32
    %c0_i32_0 = arith.constant 0 : i32
    %c0_i32_1 = arith.constant 0 : i32
    %c0_i32_2 = arith.constant 0 : i32
    return %c0_i32, %c0_i32_0, %c0_i32_1 : i32, i32, i32
  }
  func.func @transform_1(%arg0: i32) -> (i32, i32) {
    %c0_i32 = arith.constant 0 : i32
    %c0_i32_0 = arith.constant 0 : i32
    %c0_i32_1 = arith.constant 0 : i32
    return %c0_i32, %c0_i32_0 : i32, i32
  }
  func.func @transform_2(%arg0: i32) -> (i32, i32) {
    %c0_i32 = arith.constant 0 : i32
    %c0_i32_0 = arith.constant 0 : i32
    %c0_i32_1 = arith.constant 0 : i32
    return %c0_i32, %c0_i32_0 : i32, i32
  }
  func.func @transform_3(%arg0: i32) -> (i32, i32, i32) {
    %c0_i32 = arith.constant 0 : i32
    %c0_i32_0 = arith.constant 0 : i32
    %c0_i32_1 = arith.constant 0 : i32
    %c0_i32_2 = arith.constant 0 : i32
    return %c0_i32, %c0_i32_0, %c0_i32_1 : i32, i32, i32
  }
}

</mosaic_0001>

<llo_original>
// kernel: quant_first_forward.1
$region0: #{quant_first_forward.1}
  #allocation0 [shape = 'u32[]', space=smem, size = 0x4, offset = 0x4, fixed_abs, tag = 'smem constant byte address 0x4 - core index']
  #allocation1 [shape = 'u32[72,128]{1,0:T(1,128)}', space=vmem, size = 0x9000, scoped, tag = 'internal scratch']
  %s0 = inlined_call_operand.vmem [shape: f32[2,4,256], index: 0, kind: input, shape index: {}]
  %s1 = inlined_call_operand.vmem [shape: f32[8,4], index: 1, kind: input, shape index: {}]
  %s2 = inlined_call_operand.vmem [shape: f32[8,1], index: 2, kind: input, shape index: {}]
  %s3 = inlined_call_operand.vmem [shape: f32[2,8,256], index: 3, kind: output, shape index: {}]
  %s4 = sld [smem:[#allocation0]]
  $region22: #{quant_first_forward.1} parent=0
    _
  %s6 = ssub.s32 1, %s4
  %s7 = scalar_select 0, %s6, %s4
  // Predicated region
  $region2: #{quant_first_forward.1} parent=0 // pred_check
    _
  $region3: #{quant_first_forward.1} parent=0 // pred_check_branch
    %9 = sbr.rel (0) target = $region5
  $region4: #{quant_first_forward.1} parent=0 // pred_region
    _
  $region5: #{quant_first_forward.1} parent=0 // pred_fallthru
    _
  // Predicated region
  $region6: #{quant_first_forward.1} parent=0 // pred_check
    _
  $region7: #{quant_first_forward.1} parent=0 // pred_check_branch
    %11 = sbr.rel (0) target = $region9
  $region8: #{quant_first_forward.1} parent=0 // pred_region
    _
  $region9: #{quant_first_forward.1} parent=0 // pred_fallthru
    _
  // Predicated region
  $region10: #{quant_first_forward.1} parent=0 // pred_check
    _
  $region11: #{quant_first_forward.1} parent=0 // pred_check_branch
    %13 = sbr.rel (0) target = $region13
  $region12: #{quant_first_forward.1} parent=0 // pred_region
    _
  $region13: #{quant_first_forward.1} parent=0 // pred_fallthru
    _
  %v14 = vld [vmem:[%s0] sm:$0xff]
  %v15 = vld [vmem:[%s0 + $0x8] sm:$0xff]
  %v16 = vand.u32 2147483647, %v14
  %v17 = vand.u32 2147483647, %v15
  %20 = vst [vmem:[#allocation1] ss:$2 sm:$0xff] %v16
  %v21 = vld.sshfl [vmem:[#allocation1] sm:$0xff pattern:$0x75316420]
  %v22 = vld.sshfl [vmem:[#allocation1 + $0x8] sm:$0xff pattern:$0x75316420]
  %s23 = scalar_lea.vmem [#allocation1], 16
  %24 = vst [vmem:[%s23] ss:$2 sm:$0xff] %v17
  %v25 = vld.sshfl [vmem:[#allocation1 + $0x10] sm:$0xff pattern:$0x75316420]
  %v26 = vld.sshfl [vmem:[#allocation1 + $0x18] sm:$0xff pattern:$0x75316420]
  %vm31 = vcmask 1043456
  %v32 = vsel %vm31, %v21, -inf
  %v33 = vsel %vm31, %v22, -inf
  %v34 = vsel %vm31, %v25, -inf
  %v35 = vsel %vm31, %v26, -inf
  %v36 = vmax.f32 %v32, %v33
  %v37 = vmax.f32 %v34, %v35
  %v38 = vmax.f32 %v36, %v37
  %39 = vmax.xlane.f32.xlu0 %v38
  %v40 = vpop.xlane.xlu0 %39
  %v41 = vrot.slane %v40, 4
  %v42 = vmax.f32 %v40, %v41
  %v43 = vrot.slane %v42, 2
  %v44 = vmax.f32 %v42, %v43
  %v45 = vrot.slane %v44, 1
  %v46 = vmax.f32 %v44, %v45
  %s47 = vtos %v46
  %p48 = scmp.gt.f32.partialorder %s47, 0.0
  %v49 = vstv %s47
  %v50 = vrcp.pop %v49
  %v51 = vmul.f32 %v49, %v50
  %v52 = vsub.f32 1.0, %v51
  %v53 = vmul.f32 %v50, %v52
  %v54 = vadd.f32 %v50, %v53
  %vm55 = vweird.f32 %v49
  %vm56 = vweird.f32 %v50
  %vm57 = vmor %vm55, %vm56
  %v58 = vsel %vm57, %v50, %v54
  %v59 = vand.u32 2147483647, %v49
  %vm60 = vcmp.eq.f32.partialorder %v59, 8.507059e+37
  %v61 = vand.u32 %v49, 2147483648
  %v62 = vor.u32 1.1754944e-38, %v61
  %v63 = vsel %vm60, %v62, %v58
  %s64 = vtos %v63
  %s65 = smul.f32 127.0, %s64
  %s66 = scalar_select %p48, %s65, 1.0
  %v67 = vrcp.pop 127.0
  %v68 = vmul.f32 127.0, %v67
  %v69 = vsub.f32 1.0, %v68
  %v70 = vmul.f32 %v67, %v69
  %v71 = vadd.f32 %v67, %v70
  %vm72 = vweird.f32 %v67
  %v73 = vsel %vm72, %v67, %v71
  %s74 = vtos %v73
  %s75 = smul.f32 %s47, %s74
  %s76 = scalar_select %p48, %s75, 1.0
  %v77 = vstv %s66
  %v78 = vmul.f32 %v14, %v77
  %v79 = vmul.f32 %v15, %v77
  %v80 = vround.ne.pseudo %v78
  %v81 = vround.ne.pseudo %v79
  %v82 = vmax.f32 %v80, -127.0
  %v83 = vmax.f32 %v81, -127.0
  %v84 = vmin.f32 %v82, 127.0
  %v85 = vmin.f32 %v83, 127.0
  %v86 = vld [vmem:[%s1] sm:$0xff]
  %v87 = vstv %s76
  %v88 = vmul.f32 %v86, %v87
  %v89 = vld [vmem:[%s2] sm:$0xff]
  %91 = vset.pattern.permute.xlu0 0
  %92 = vperm.xlu0 %91, %v88
  %v93 = vpop.permute.xlu0 %92
  %v96 = vperm.slane %v84, 0
  %v97 = vperm.slane %v84, 4
  %v100 = vperm.slane %v96, 0
  %v101 = vperm.slane %v97, 0
  %v102 = vmul.f32 %v93, %v100
  %v103 = vmul.f32 %v93, %v101
  %105 = vset.pattern.permute.xlu0 0
  %106 = vperm.xlu0 %105, %v89
  %v107 = vpop.permute.xlu0 %106
  %v109 = vadd.f32 %v107, %v102
  %v110 = vadd.f32 %v107, %v103
  %111 = vset.pattern.permute.xlu0 1
  %112 = vperm.xlu0 %111, %v88
  %v113 = vpop.permute.xlu0 %112
  %v115 = vperm.slane %v84, 1
  %v116 = vperm.slane %v84, 5
  %v119 = vperm.slane %v115, 1
  %v120 = vperm.slane %v116, 1
  %v121 = vmul.f32 %v113, %v119
  %v122 = vmul.f32 %v113, %v120
  %v123 = vadd.f32 %v109, %v121
  %v124 = vadd.f32 %v110, %v122
  %125 = vset.pattern.permute.xlu0 2
  %126 = vperm.xlu0 %125, %v88
  %v127 = vpop.permute.xlu0 %126
  %v129 = vperm.slane %v84, 2
  %v130 = vperm.slane %v84, 6
  %v133 = vperm.slane %v129, 2
  %v134 = vperm.slane %v130, 2
  %v135 = vmul.f32 %v127, %v133
  %v136 = vmul.f32 %v127, %v134
  %v137 = vadd.f32 %v123, %v135
  %v138 = vadd.f32 %v124, %v136
  %139 = vset.pattern.permute.xlu0 3
  %140 = vperm.xlu0 %139, %v88
  %v141 = vpop.permute.xlu0 %140
  %v143 = vperm.slane %v84, 3
  %v144 = vperm.slane %v84, 7
  %v147 = vperm.slane %v143, 3
  %v148 = vperm.slane %v144, 3
  %v149 = vmul.f32 %v141, %v147
  %v150 = vmul.f32 %v141, %v148
  %v151 = vadd.f32 %v137, %v149
  %v152 = vadd.f32 %v138, %v150
  %153 = vst [vmem:[%s3] sm:$0xff] %v151
  %154 = vst [vmem:[%s3 + $0x8] sm:$0xff] %v152
  %v156 = vperm.slane %v85, 0
  %v157 = vperm.slane %v85, 4
  %v160 = vperm.slane %v156, 0
  %v161 = vperm.slane %v157, 0
  %v162 = vmul.f32 %v93, %v160
  %v163 = vmul.f32 %v93, %v161
  %v164 = vadd.f32 %v107, %v162
  %v165 = vadd.f32 %v107, %v163
  %v166 = vperm.slane %v85, 1
  %v167 = vperm.slane %v85, 5
  %v170 = vperm.slane %v166, 1
  %v171 = vperm.slane %v167, 1
  %v172 = vmul.f32 %v113, %v170
  %v173 = vmul.f32 %v113, %v171
  %v174 = vadd.f32 %v164, %v172
  %v175 = vadd.f32 %v165, %v173
  %v176 = vperm.slane %v85, 2
  %v177 = vperm.slane %v85, 6
  %v180 = vperm.slane %v176, 2
  %v181 = vperm.slane %v177, 2
  %v182 = vmul.f32 %v127, %v180
  %v183 = vmul.f32 %v127, %v181
  %v184 = vadd.f32 %v174, %v182
  %v185 = vadd.f32 %v175, %v183
  %v186 = vperm.slane %v85, 3
  %v187 = vperm.slane %v85, 7
  %v190 = vperm.slane %v186, 3
  %v191 = vperm.slane %v187, 3
  %v192 = vmul.f32 %v141, %v190
  %v193 = vmul.f32 %v141, %v191
  %v194 = vadd.f32 %v184, %v192
  %v195 = vadd.f32 %v185, %v193
  %s196 = scalar_lea.vmem %s3, 16
  %197 = vst [vmem:[%s196] sm:$0xff] %v194
  %198 = vst [vmem:[%s196 + $0x8] sm:$0xff] %v195
  // Predicated region
  $region14: #{quant_first_forward.1} parent=0 // pred_check
    _
  $region15: #{quant_first_forward.1} parent=0 // pred_check_branch
    %200 = sbr.rel (0) target = $region17
  $region16: #{quant_first_forward.1} parent=0 // pred_region
    _
  $region17: #{quant_first_forward.1} parent=0 // pred_fallthru
    _
  // Predicated region
  $region18: #{quant_first_forward.1} parent=0 // pred_check
    _
  $region19: #{quant_first_forward.1} parent=0 // pred_check_branch
    %202 = sbr.rel (0) target = $region21
  $region20: #{quant_first_forward.1} parent=0 // pred_region
    _
  $region21: #{quant_first_forward.1} parent=0 // pred_fallthru
    _

</llo_original>
